<compile_context>
chip_gen: v7x
topology: tpu7x:2x2x1
jax: 0.10.0
libtpu: 0.0.40
codegen_flags: <defaults>
</compile_context>

<pallas_src>
import functools
import inspect

import jax
import jax.numpy as jnp
from jax.experimental import pallas as pl
from jax.experimental.pallas import tpu as pltpu

_SUBLANE = 8
_LANE = 128

# Compat shim: CompilerParams was named TPUCompilerParams in some JAX releases.
_CompilerParamsCls = getattr(pltpu, "CompilerParams", None) or getattr(
    pltpu, "TPUCompilerParams", None
)

# Memory-space handles (newer JAX exposes pltpu.MemorySpace; older exposes the
# members directly).
try:
    _VMEM_SPACE = pltpu.MemorySpace.VMEM
    _SMEM_SPACE = pltpu.MemorySpace.SMEM
except AttributeError:  # pragma: no cover - older JAX
    _VMEM_SPACE = pltpu.VMEM
    _SMEM_SPACE = pltpu.SMEM


def _compiler_params(**kwargs):
    """Build Mosaic compiler params, dropping ONLY unsupported kwargs.

    (Previous shim dropped all kwargs on any TypeError, silently losing both
    dimension_semantics and vmem_limit_bytes.)
    """
    if _CompilerParamsCls is None:
        return None
    try:
        valid = set(inspect.signature(_CompilerParamsCls).parameters)
        kwargs = {k: v for k, v in kwargs.items() if k in valid}
    except (TypeError, ValueError):
        pass
    while True:
        try:
            return _CompilerParamsCls(**kwargs)
        except TypeError:
            if not kwargs:
                return None
            kwargs.pop(next(reversed(kwargs)))


def _cost_estimate(flops, transcendentals, bytes_accessed):
    ce_cls = getattr(pl, "CostEstimate", None)
    if ce_cls is None:
        return None
    try:
        return ce_cls(
            flops=int(flops),
            transcendentals=int(transcendentals),
            bytes_accessed=int(bytes_accessed),
        )
    except TypeError:
        return None


def _round_up(x, m):
    return ((x + m - 1) // m) * m


def _hw_budgets():
    """Per-buffer block budgets + scoped-VMEM limit, gated on the generation.

    Returns (mse_block_bytes, ce_block_bytes, vmem_limit_bytes).
      * v5e / v6e (128 MiB physical VMEM): 6 MiB / 4 MiB blocks, 64 MiB limit.
      * v7x (64 MiB physical) or unknown part: 3 MiB / 2 MiB blocks, 32 MiB.
    The CE budget is smaller because the in-kernel f32 upcast / exp / iota /
    select intermediates multiply the input-tile footprint ~4-5x.
    """
    vmem_cap = None
    try:
        info_fn = getattr(pltpu, "get_tpu_info", None)
        if info_fn is not None:
            info = info_fn()
            vmem_cap = getattr(info, "vmem_capacity_bytes", None)
    except Exception:  # defensive: never let an info query break tracing
        vmem_cap = None
    if vmem_cap is not None and vmem_cap >= (96 << 20):
        return (6 << 20, 4 << 20, 64 << 20)
    return (3 << 20, 2 << 20, 32 << 20)


def _pick_row_tile(n_rows, row_bytes, budget_bytes):
    """Largest row tile whose input block fits the byte budget (no row cap).

    Returns n_rows itself (single full-extent block) when everything fits,
    otherwise a multiple of 128 so a lane-dense (1, tr) mask block is legal.
    """
    fit = budget_bytes // max(int(row_bytes), 1)
    if fit >= n_rows:
        return int(n_rows)
    # TODO(synk): for extremely wide rows (row_bytes * 128 >> budget) add a
    # feature-axis grid instead of letting the 128-row floor overshoot VMEM.
    return max(_LANE, (fit // _LANE) * _LANE)


# ----------------------------------------------------------------------------
# Kernel 1: row-tiled masked MSE.
#   pred/true: (TR, D) native dtype; w: (1, TR) f32 lane-dense (1 keep / 0 drop).
#   grid = cdiv(n, TR); the last block's out-of-range rows are masked in-kernel
#   (selected to 0 BEFORE any arithmetic, since OOB data may be NaN/Inf).
#   Each grid step writes its partial (sum, count) into a lane-dense (1,8,128)
#   tile; the final divide happens in JAX.
# ----------------------------------------------------------------------------
def _masked_mse_tile_kernel(pred_ref, true_ref, w_ref, psum_ref, pcnt_ref, *,
                            n_rows):
    i = pl.program_id(0)
    tr, d = pred_ref.shape
    p = pred_ref[...].astype(jnp.float32)   # cast in-kernel (VPU), no HBM copies
    t = true_ref[...].astype(jnp.float32)

    # Tail-row mask: select, don't multiply (garbage rows may hold NaN/Inf).
    row_ids = jax.lax.broadcasted_iota(jnp.int32, (tr, 1), 0) + i * tr
    diff = jnp.where(row_ids < n_rows, p - t, 0.0)
    sq = diff * diff                                            # (TR, D) f32

    # Lane-dense row weights; zero the OOB tail of the weight block too.
    col_ids = jax.lax.broadcasted_iota(jnp.int32, (1, tr), 1) + i * tr
    w = jnp.where(col_ids < n_rows, w_ref[...], 0.0)            # (1, TR) f32

    # Row contraction on the MXU: (1, TR) @ (TR, D) -> (1, D), then lane-sum.
    s = jnp.sum(jnp.dot(w, sq, preferred_element_type=jnp.float32))
    c = jnp.sum(w) * jnp.float32(d)
    psum_ref[...] = jnp.full(psum_ref.shape, s, jnp.float32)
    pcnt_ref[...] = jnp.full(pcnt_ref.shape, c, jnp.float32)


def masked_mse_tiled(pred, true, w, tr=None):
    """mean((pred[w>0] - true[w>0])**2) with a 0/1 per-row weight w of shape (n,)."""
    n, d = pred.shape
    w = w.reshape(1, n).astype(jnp.float32)       # lane-dense: avoids 128x padding
    mse_budget, _, vmem_limit = _hw_budgets()
    if tr is None:
        row_bytes = _round_up(d, _LANE) * pred.dtype.itemsize   # VMEM-padded row
        tr = _pick_row_tile(n, row_bytes, mse_budget)
    nblk = pl.cdiv(n, tr)

    kernel = functools.partial(_masked_mse_tile_kernel, n_rows=n)
    psum, pcnt = pl.pallas_call(
        kernel,
        grid=(nblk,),
        in_specs=[
            pl.BlockSpec((tr, d), lambda i: (i, 0)),
            pl.BlockSpec((tr, d), lambda i: (i, 0)),
            pl.BlockSpec((1, tr), lambda i: (0, i)),
        ],
        out_specs=(
            pl.BlockSpec((1, _SUBLANE, _LANE), lambda i: (i, 0, 0)),
            pl.BlockSpec((1, _SUBLANE, _LANE), lambda i: (i, 0, 0)),
        ),
        out_shape=(
            jax.ShapeDtypeStruct((nblk, _SUBLANE, _LANE), jnp.float32),
            jax.ShapeDtypeStruct((nblk, _SUBLANE, _LANE), jnp.float32),
        ),
        compiler_params=_compiler_params(
            dimension_semantics=("parallel",),
            vmem_limit_bytes=vmem_limit,
        ),
        cost_estimate=_cost_estimate(
            flops=4 * n * d,
            transcendentals=0,
            bytes_accessed=2 * n * d * pred.dtype.itemsize + 4 * n,
        ),
    )(pred, true, w)

    s = jnp.sum(psum[:, 0, 0])
    c = jnp.sum(pcnt[:, 0, 0])
    # Clamp: an all-masked modality yields 0, not NaN (intentional divergence).
    return s / jnp.maximum(c, 1.0)


# ----------------------------------------------------------------------------
# Kernel 2: row- and vocab-tiled masked cross-entropy with an online logsumexp.
#   logits: (TR, TV) native dtype; labels: (TR, 1) int32 with negatives dropped.
#   Running (max, sum, target-logit) live in VMEM scratch across the vocab axis,
#   so per-step VMEM is bounded independent of the vocabulary size.
# ----------------------------------------------------------------------------
def _masked_ce_tile_kernel(logits_ref, labels_ref, psum_ref, pcnt_ref,
                           m_sc, l_sc, t_sc, *, n_rows, n_vocab):
    i = pl.program_id(0)              # row block   ("parallel")
    j = pl.program_id(1)              # vocab block ("arbitrary", innermost)
    tr, tv = logits_ref.shape
    neg = jnp.float32(-1e30)

    @pl.when(j == 0)
    def _():
        m_sc[...] = jnp.full_like(m_sc, neg)
        l_sc[...] = jnp.zeros_like(l_sc)
        t_sc[...] = jnp.zeros_like(t_sc)

    x = logits_ref[...].astype(jnp.float32)                     # (TR, TV)
    labels = labels_ref[...]                                    # (TR, 1) int32
    row_ids = jax.lax.broadcasted_iota(jnp.int32, (tr, 1), 0) + i * tr
    in_rows = row_ids < n_rows
    col_ids = jax.lax.broadcasted_iota(jnp.int32, (tr, tv), 1) + j * tv
    # OOB rows hold undefined data (maybe NaN) -> select to 0 before any math;
    # OOB vocab columns of a tail block get a very negative logit.
    x = jnp.where(in_rows, x, 0.0)
    x = jnp.where(col_ids < n_vocab, x, neg)

    # Online logsumexp across vocab blocks: running max + rescaled running sum.
    blk_max = jnp.max(x, axis=-1, keepdims=True)
    m_new = jnp.maximum(m_sc[...], blk_max)
    l_sc[...] = (l_sc[...] * jnp.exp(m_sc[...] - m_new)
                 + jnp.sum(jnp.exp(x - m_new), axis=-1, keepdims=True))
    m_sc[...] = m_new
    # Gather the target logit for labels landing in this vocab block
    # (single select + sum; no one-hot cast/multiply).
    t_sc[...] = t_sc[...] + jnp.sum(
        jnp.where(col_ids == labels, x, 0.0), axis=-1, keepdims=True)

    @pl.when(j == pl.num_programs(1) - 1)
    def _():
        valid = jnp.logical_and(labels >= 0, in_rows).astype(jnp.float32)
        per_row = (jnp.log(l_sc[...]) + m_sc[...] - t_sc[...]) * valid
        psum_ref[...] = jnp.full(psum_ref.shape, jnp.sum(per_row), jnp.float32)
        pcnt_ref[...] = jnp.full(pcnt_ref.shape, jnp.sum(valid), jnp.float32)


def masked_cross_entropy_tiled(logits, labels_eff, tr=None, tv=None):
    """Mean CE over rows with labels >= 0 (mask / ignore_index folded into labels)."""
    n, v = logits.shape
    labels_eff = labels_eff.reshape(n, 1).astype(jnp.int32)
    _, ce_budget, vmem_limit = _hw_budgets()
    itemsize = logits.dtype.itemsize
    if tv is None:
        # Full vocab per block when a >=128-row tile still fits the budget,
        # otherwise tile the vocab axis (multiple of 128) and run online LSE.
        cap = (ce_budget // (_LANE * itemsize)) // _LANE * _LANE
        tv = v if cap >= v else max(_LANE, cap)
    if tr is None:
        row_bytes = _round_up(tv, _LANE) * itemsize
        tr = _pick_row_tile(n, row_bytes, ce_budget)
    nrb = pl.cdiv(n, tr)
    nvb = pl.cdiv(v, tv)

    kernel = functools.partial(_masked_ce_tile_kernel, n_rows=n, n_vocab=v)
    psum, pcnt = pl.pallas_call(
        kernel,
        grid=(nrb, nvb),
        in_specs=[
            pl.BlockSpec((tr, tv), lambda i, j: (i, j)),
            pl.BlockSpec((tr, 1), lambda i, j: (i, 0)),
        ],
        out_specs=(
            pl.BlockSpec((1, _SUBLANE, _LANE), lambda i, j: (i, 0, 0)),
            pl.BlockSpec((1, _SUBLANE, _LANE), lambda i, j: (i, 0, 0)),
        ),
        out_shape=(
            jax.ShapeDtypeStruct((nrb, _SUBLANE, _LANE), jnp.float32),
            jax.ShapeDtypeStruct((nrb, _SUBLANE, _LANE), jnp.float32),
        ),
        scratch_shapes=[
            pltpu.VMEM((tr, 1), jnp.float32),   # running max
            pltpu.VMEM((tr, 1), jnp.float32),   # running (rescaled) sum of exp
            pltpu.VMEM((tr, 1), jnp.float32),   # target-logit accumulator
        ],
        compiler_params=_compiler_params(
            dimension_semantics=("parallel", "arbitrary"),
            vmem_limit_bytes=vmem_limit,
        ),
        cost_estimate=_cost_estimate(
            flops=5 * n * v,
            transcendentals=n * v,
            bytes_accessed=n * v * itemsize + 4 * n,
        ),
    )(logits, labels_eff)

    s = jnp.sum(psum[:, 0, 0])
    c = jnp.sum(pcnt[:, 0, 0])
    return s / jnp.maximum(c, 1.0)


# ----------------------------------------------------------------------------
# Kernel 3: fused tiny losses — xyz MSE, t MSE, and both CLIP contrastive terms
# in a single pallas_call (launch overhead dominates these otherwise).
# ----------------------------------------------------------------------------
def _fused_small_kernel(pxyz_ref, txyz_ref, pt_ref, tt_ref,
                        vpool_ref, lpool_ref, spool_ref, out_ref, *, inv_temp):
    # --- spatial / temporal MSE (unweighted, static element count) ---
    dx = pxyz_ref[...].astype(jnp.float32) - txyz_ref[...].astype(jnp.float32)
    out_ref[0] = jnp.sum(dx * dx) / jnp.float32(
        pxyz_ref.shape[0] * pxyz_ref.shape[1])
    dt = pt_ref[...].astype(jnp.float32) - tt_ref[...].astype(jnp.float32)
    out_ref[1] = jnp.sum(dt * dt) / jnp.float32(pt_ref.shape[0] * pt_ref.shape[1])

    # --- CLIP-style contrastive; vision_pool normalized once and reused ---
    def _normalize(x):
        # Matches F.normalize(x, dim=-1): x / max(||x||_2, 1e-12)
        return x / jnp.maximum(
            jnp.sqrt(jnp.sum(x * x, axis=-1, keepdims=True)), 1e-12)

    v_n = _normalize(vpool_ref[...].astype(jnp.float32))
    l_n = _normalize(lpool_ref[...].astype(jnp.float32))
    s_n = _normalize(spool_ref[...].astype(jnp.float32))
    bsz = jnp.float32(v_n.shape[0])
    # Feed the MXU the native low-precision dtype when the pools are 16-bit;
    # keep f32 operands for f32 inputs (accumulation is f32 either way).
    mm_dtype = (vpool_ref.dtype
                if jnp.dtype(vpool_ref.dtype).itemsize == 2 else jnp.float32)

    def _clip_pair(a_n, b_n):
        # ONE (B, B) matmul, contracting last dims (no materialized b_n.T).
        # The reverse direction is logits.T, so take column-wise LSE of the
        # same matrix instead of a second full matmul.
        lg = jax.lax.dot_general(
            a_n.astype(mm_dtype), b_n.astype(mm_dtype),
            (((1,), (1,)), ((), ())),
            preferred_element_type=jnp.float32) * inv_temp
        diag_sum = jnp.sum(a_n * b_n) * inv_temp      # sum of diag(lg), elementwise
        m_r = jnp.max(lg, axis=1, keepdims=True)
        lse_r = jnp.sum(
            jnp.log(jnp.sum(jnp.exp(lg - m_r), axis=1, keepdims=True)) + m_r)
        m_c = jnp.max(lg, axis=0, keepdims=True)
        lse_c = jnp.sum(
            jnp.log(jnp.sum(jnp.exp(lg - m_c), axis=0, keepdims=True)) + m_c)
        return 0.5 * ((lse_r - diag_sum) + (lse_c - diag_sum)) / bsz

    out_ref[2] = _clip_pair(v_n, l_n)
    out_ref[3] = _clip_pair(v_n, s_n)


def fused_small_losses(pred_xyz, true_xyz, pred_t, true_t,
                       vision_pool, language_pool, spatial_pool, temperature):
    # TODO(synk): for production batch sizes add a row-tiled grid over the
    # pools (online LSE over the (B, B) logits) so the B^2 f32 intermediates
    # stay bounded and both v7x TensorCores are used.
    _, _, vmem_limit = _hw_budgets()
    # inv_temp is a plain Python float so it becomes a jaxpr literal.
    kernel = functools.partial(
        _fused_small_kernel, inv_temp=float(1.0 / float(temperature)))
    out = pl.pallas_call(
        kernel,
        out_shape=jax.ShapeDtypeStruct((4,), jnp.float32),
        in_specs=[pl.BlockSpec(memory_space=_VMEM_SPACE)] * 7,
        out_specs=pl.BlockSpec(memory_space=_SMEM_SPACE),
        compiler_params=_compiler_params(vmem_limit_bytes=vmem_limit),
    )(pred_xyz, true_xyz, pred_t, true_t, vision_pool, language_pool, spatial_pool)
    return out[0], out[1], out[2], out[3]


# Plain-JAX fallback for unusual partial-presence combinations of the tiny
# terms (launch overhead would dominate separate Pallas calls).
def _clip_loss_jax(a, b, temperature):
    a = a.astype(jnp.float32)
    b = b.astype(jnp.float32)
    a_n = a / jnp.maximum(jnp.linalg.norm(a, axis=-1, keepdims=True), 1e-12)
    b_n = b / jnp.maximum(jnp.linalg.norm(b, axis=-1, keepdims=True), 1e-12)
    lg = (a_n @ b_n.T) / temperature
    diag = jnp.diag(lg)
    la = jnp.mean(jax.scipy.special.logsumexp(lg, axis=1) - diag)
    lb = jnp.mean(jax.scipy.special.logsumexp(lg, axis=0) - diag)
    return 0.5 * (la + lb)


# ----------------------------------------------------------------------------
# DeepEarthLoss forward (glue in plain JAX, reductions in Pallas kernels)
# ----------------------------------------------------------------------------
class DeepEarthLossPallas:
    def __init__(self, spatial_weight=1.0, temporal_weight=1.0, vision_weight=1.0,
                 language_weight=1.0, contrastive_weight=1.0, temperature=0.07):
        self.spatial_weight = spatial_weight
        self.temporal_weight = temporal_weight
        self.vision_weight = vision_weight
        self.language_weight = language_weight
        self.contrastive_weight = contrastive_weight
        self.temperature = temperature

    def __call__(self, outputs, targets, masks):
        losses = {}
        recon = outputs["reconstructions"]

        have_xyz = "xyz" in recon and "xyz" in targets
        have_t = "t" in recon and "t" in targets
        have_vision = "vision" in recon and "vision" in targets
        have_language = "language" in recon and "language" in targets
        have_vl = "vision_pool" in outputs and "language_pool" in outputs
        have_vs = "vision_pool" in outputs and "spatial_pool" in outputs

        # --- tiny terms: one fused Pallas call when all present ---
        if have_xyz and have_t and have_vl and have_vs:
            pxyz = recon["xyz"].reshape(-1, recon["xyz"].shape[-1])
            txyz = targets["xyz"].reshape(pxyz.shape)
            pt = recon["t"].reshape(-1, recon["t"].shape[-1])
            tt = targets["t"].reshape(pt.shape)
            sp, tp, c_vl, c_vs = fused_small_losses(
                pxyz, txyz, pt, tt,
                outputs["vision_pool"], outputs["language_pool"],
                outputs["spatial_pool"], self.temperature)
            losses["spatial"] = sp
            losses["temporal"] = tp
            losses["vision_language_contrastive"] = c_vl
            losses["vision_spatial_contrastive"] = c_vs
        else:
            if have_xyz:
                losses["spatial"] = jnp.mean(
                    (recon["xyz"].astype(jnp.float32)
                     - targets["xyz"].astype(jnp.float32)) ** 2)
            if have_t:
                losses["temporal"] = jnp.mean(
                    (recon["t"].astype(jnp.float32)
                     - targets["t"].astype(jnp.float32)) ** 2)
            if have_vl:
                losses["vision_language_contrastive"] = _clip_loss_jax(
                    outputs["vision_pool"], outputs["language_pool"],
                    self.temperature)
            if have_vs:
                losses["vision_spatial_contrastive"] = _clip_loss_jax(
                    outputs["vision_pool"], outputs["spatial_pool"],
                    self.temperature)

        # --- vision masked MSE (row-tiled Pallas reduction) ---
        if have_vision:
            pv = recon["vision"]
            tv = targets["vision"]
            d = pv.shape[-1]
            p2 = pv.reshape(-1, d)
            t2 = tv.reshape(p2.shape)
            m = masks.get("vision")
            if m is not None:
                w = m.reshape(-1).astype(jnp.float32)
            else:
                w = jnp.ones((p2.shape[0],), jnp.float32)
            losses["vision"] = masked_mse_tiled(p2, t2, w)

        # --- language masked CE (row/vocab-tiled Pallas reduction) ---
        if have_language:
            logits = recon["language"]
            labels = targets["language"]
            v = logits.shape[-1]
            logits2 = logits.reshape(-1, v)
            labels1 = labels.reshape(-1).astype(jnp.int32)
            keep = labels1 != -100                      # ignore_index
            m = masks.get("language")
            if m is not None:
                keep = jnp.logical_and(keep, m.reshape(-1))
            labels_eff = jnp.where(keep, labels1, -100)  # fold mask into labels
            losses["language"] = masked_cross_entropy_tiled(logits2, labels_eff)

        # --- total (accumulated in the original module's order) ---
        total = jnp.float32(0.0)
        if "spatial" in losses:
            total = total + self.spatial_weight * losses["spatial"]
        if "temporal" in losses:
            total = total + self.temporal_weight * losses["temporal"]
        if "vision" in losses:
            total = total + self.vision_weight * losses["vision"]
        if "language" in losses:
            total = total + self.language_weight * losses["language"]
        if "vision_language_contrastive" in losses:
            total = total + self.contrastive_weight * losses["vision_language_contrastive"]
        if "vision_spatial_contrastive" in losses:
            total = total + self.contrastive_weight * losses["vision_spatial_contrastive"]
        losses["total"] = total
        return total, losses


# ----------------------------------------------------------------------------
# Pure-JAX reference for a sanity check
# ----------------------------------------------------------------------------
def _reference(outputs, targets, masks, temperature=0.07):
    recon = outputs["reconstructions"]
    total = 0.0
    total += jnp.mean((recon["xyz"] - targets["xyz"]) ** 2)
    total += jnp.mean((recon["t"] - targets["t"]) ** 2)
    mv = masks["vision"].astype(jnp.float32)[..., None]
    total += jnp.sum(mv * (recon["vision"] - targets["vision"]) ** 2) / (
        jnp.sum(mv) * recon["vision"].shape[-1]
    )
    logits = recon["language"].reshape(-1, recon["language"].shape[-1])
    labels = targets["language"].reshape(-1)
    sel = masks["language"].reshape(-1).astype(jnp.float32)
    valid = sel * (labels != -100).astype(jnp.float32)
    lse = jax.scipy.special.logsumexp(logits, axis=-1)
    tgt = jnp.take_along_axis(logits, jnp.clip(labels, 0)[:, None], axis=-1)[:, 0]
    total += jnp.sum(valid * (lse - tgt)) / jnp.sum(valid)
    total += _clip_loss_jax(outputs["vision_pool"], outputs["language_pool"],
                            temperature)
    total += _clip_loss_jax(outputs["vision_pool"], outputs["spatial_pool"],
                            temperature)
    return total


if __name__ == "__main__":
    key = jax.random.PRNGKey(0)
    ks = jax.random.split(key, 12)

    B, Nv, Dv, L, V, D = 8, 16, 32, 8, 128, 32

    pred_xyz = jax.random.normal(ks[0], (B, 3), jnp.float32)
    true_xyz = jax.random.normal(ks[1], (B, 3), jnp.float32)
    pred_t = jax.random.normal(ks[2], (B, 1), jnp.float32)
    true_t = jax.random.normal(ks[3], (B, 1), jnp.float32)
    pred_vis = jax.random.normal(ks[4], (B, Nv, Dv), jnp.float32)
    true_vis = jax.random.normal(ks[5], (B, Nv, Dv), jnp.float32)
    vis_mask = jax.random.bernoulli(ks[6], 0.5, (B, Nv))
    pred_lang = jax.random.normal(ks[7], (B, L, V), jnp.float32)
    true_lang = jax.random.randint(ks[8], (B, L), 0, V, jnp.int32)
    true_lang = true_lang.at[0, 0].set(-100).at[1, 3].set(-100)  # ignore_index rows
    lang_mask = jax.random.bernoulli(ks[9], 0.6, (B, L))
    vision_pool = jax.random.normal(ks[10], (B, D), jnp.float32)
    language_pool = jax.random.normal(ks[11], (B, D), jnp.float32)
    spatial_pool = jax.random.normal(jax.random.PRNGKey(42), (B, D), jnp.float32)

    outputs = {
        "reconstructions": {
            "xyz": pred_xyz,
            "t": pred_t,
            "vision": pred_vis,
            "language": pred_lang,
        },
        "vision_pool": vision_pool,
        "language_pool": language_pool,
        "spatial_pool": spatial_pool,
    }
    targets = {"xyz": true_xyz, "t": true_t, "vision": true_vis,
               "language": true_lang}
    masks = {"vision": vis_mask, "language": lang_mask}

    loss_fn = DeepEarthLossPallas()
    total, losses = loss_fn(outputs, targets, masks)
    total = jax.block_until_ready(total)

    ref = jax.block_until_ready(_reference(outputs, targets, masks))
    assert jnp.allclose(total, ref, rtol=1e-3, atol=1e-3), (total, ref)

    # --- extra check 1: MSE tail-row masking path (n % tr != 0, forced tile) ---
    n2, d2 = 300, 96
    kk = jax.random.split(jax.random.PRNGKey(7), 3)
    a2 = jax.random.normal(kk[0], (n2, d2), jnp.float32)
    b2 = jax.random.normal(kk[1], (n2, d2), jnp.float32)
    w2 = jax.random.bernoulli(kk[2], 0.5, (n2,)).astype(jnp.float32)
    got_mse = masked_mse_tiled(a2, b2, w2, tr=128)
    ref_mse = jnp.sum(w2[:, None] * (a2 - b2) ** 2) / (jnp.sum(w2) * d2)
    assert jnp.allclose(got_mse, ref_mse, rtol=1e-3, atol=1e-3), (got_mse, ref_mse)

    # --- extra check 2: CE online-LSE across vocab blocks + row/vocab tails ---
    n3, v3 = 300, 300
    kk = jax.random.split(jax.random.PRNGKey(11), 2)
    lg3 = jax.random.normal(kk[0], (n3, v3), jnp.float32)
    lb3 = jax.random.randint(kk[1], (n3,), 0, v3, jnp.int32)
    lb3 = lb3.at[::7].set(-100)
    got_ce = masked_cross_entropy_tiled(lg3, lb3, tr=128, tv=128)
    valid3 = (lb3 >= 0).astype(jnp.float32)
    lse3 = jax.scipy.special.logsumexp(lg3, axis=-1)
    tgt3 = jnp.take_along_axis(lg3, jnp.clip(lb3, 0)[:, None], axis=-1)[:, 0]
    ref_ce = jnp.sum(valid3 * (lse3 - tgt3)) / jnp.sum(valid3)
    assert jnp.allclose(got_ce, ref_ce, rtol=1e-3, atol=1e-3), (got_ce, ref_ce)

    print("KERNEL_OK")
</pallas_src>

<mosaic_0001>
module attributes {stable_mosaic.version = 11 : i64} {
  func.func @_fused_small_kernel(%arg0: memref<8x3xf32, #tpu.memory_space<vmem>>, %arg1: memref<8x3xf32, #tpu.memory_space<vmem>>, %arg2: memref<8x1xf32, #tpu.memory_space<vmem>>, %arg3: memref<8x1xf32, #tpu.memory_space<vmem>>, %arg4: memref<8x32xf32, #tpu.memory_space<vmem>>, %arg5: memref<8x32xf32, #tpu.memory_space<vmem>>, %arg6: memref<8x32xf32, #tpu.memory_space<vmem>>, %arg7: memref<4xf32, #tpu.memory_space<smem>>) attributes {dimension_semantics = [], scalar_prefetch = 0 : i64, scratch_operands = 0 : i64, tpu.core_type = #tpu.core_type<tc>} {
    %c0 = arith.constant 0 : index
    %c0_0 = arith.constant 0 : index
    %0 = vector.load %arg0[%c0, %c0_0] : memref<8x3xf32, #tpu.memory_space<vmem>>, vector<8x3xf32>
    %c0_1 = arith.constant 0 : index
    %c0_2 = arith.constant 0 : index
    %1 = vector.load %arg1[%c0_1, %c0_2] : memref<8x3xf32, #tpu.memory_space<vmem>>, vector<8x3xf32>
    %2 = arith.subf %0, %1 : vector<8x3xf32>
    %3 = arith.mulf %2, %2 : vector<8x3xf32>
    %4 = vector.shape_cast %3 : vector<8x3xf32> to vector<1x8x3xf32>
    %cst = arith.constant dense<0.000000e+00> : vector<1xf32>
    %5 = vector.multi_reduction <add>, %4, %cst [1, 2] : vector<1x8x3xf32> to vector<1xf32>
    %6 = vector.shape_cast %5 : vector<1xf32> to vector<1x1x1xf32>
    %7 = vector.extract %6[0, 0, 0] : f32 from vector<1x1x1xf32>
    %cst_3 = arith.constant 2.400000e+01 : f32
    %8 = arith.divf %7, %cst_3 : f32
    %c0_4 = arith.constant 0 : index
    %9 = memref.load %arg7[%c0_4] : memref<4xf32, #tpu.memory_space<smem>>
    memref.store %8, %arg7[%c0_4] : memref<4xf32, #tpu.memory_space<smem>>
    %c0_5 = arith.constant 0 : index
    %c0_6 = arith.constant 0 : index
    %10 = vector.load %arg2[%c0_5, %c0_6] : memref<8x1xf32, #tpu.memory_space<vmem>>, vector<8x1xf32>
    %c0_7 = arith.constant 0 : index
    %c0_8 = arith.constant 0 : index
    %11 = vector.load %arg3[%c0_7, %c0_8] : memref<8x1xf32, #tpu.memory_space<vmem>>, vector<8x1xf32>
    %12 = arith.subf %10, %11 : vector<8x1xf32>
    %13 = arith.mulf %12, %12 : vector<8x1xf32>
    %14 = vector.shape_cast %13 : vector<8x1xf32> to vector<1x8x1xf32>
    %cst_9 = arith.constant dense<0.000000e+00> : vector<1xf32>
    %15 = vector.multi_reduction <add>, %14, %cst_9 [1, 2] : vector<1x8x1xf32> to vector<1xf32>
    %16 = vector.shape_cast %15 : vector<1xf32> to vector<1x1x1xf32>
    %17 = vector.extract %16[0, 0, 0] : f32 from vector<1x1x1xf32>
    %cst_10 = arith.constant 8.000000e+00 : f32
    %18 = arith.divf %17, %cst_10 : f32
    %c1 = arith.constant 1 : index
    %19 = memref.load %arg7[%c1] : memref<4xf32, #tpu.memory_space<smem>>
    memref.store %18, %arg7[%c1] : memref<4xf32, #tpu.memory_space<smem>>
    %c0_11 = arith.constant 0 : index
    %c0_12 = arith.constant 0 : index
    %20 = vector.load %arg4[%c0_11, %c0_12] : memref<8x32xf32, #tpu.memory_space<vmem>>, vector<8x32xf32>
    %21 = arith.mulf %20, %20 : vector<8x32xf32>
    %cst_13 = arith.constant dense<0.000000e+00> : vector<8xf32>
    %22 = vector.multi_reduction <add>, %21, %cst_13 [1] : vector<8x32xf32> to vector<8xf32>
    %23 = vector.shape_cast %22 : vector<8xf32> to vector<8x1xf32>
    %24 = math.sqrt %23 : vector<8x1xf32>
    %cst_14 = arith.constant 9.99999996E-13 : f32
    %25 = vector.broadcast %cst_14 : f32 to vector<8x1xf32>
    %26 = arith.maximumf %24, %25 : vector<8x1xf32>
    %27 = vector.broadcast %26 : vector<8x1xf32> to vector<8x32xf32>
    %28 = arith.divf %20, %27 : vector<8x32xf32>
    %c0_15 = arith.constant 0 : index
    %c0_16 = arith.constant 0 : index
    %29 = vector.load %arg5[%c0_15, %c0_16] : memref<8x32xf32, #tpu.memory_space<vmem>>, vector<8x32xf32>
    %30 = arith.mulf %29, %29 : vector<8x32xf32>
    %cst_17 = arith.constant dense<0.000000e+00> : vector<8xf32>
    %31 = vector.multi_reduction <add>, %30, %cst_17 [1] : vector<8x32xf32> to vector<8xf32>
    %32 = vector.shape_cast %31 : vector<8xf32> to vector<8x1xf32>
    %33 = math.sqrt %32 : vector<8x1xf32>
    %cst_18 = arith.constant 9.99999996E-13 : f32
    %34 = vector.broadcast %cst_18 : f32 to vector<8x1xf32>
    %35 = arith.maximumf %33, %34 : vector<8x1xf32>
    %36 = vector.broadcast %35 : vector<8x1xf32> to vector<8x32xf32>
    %37 = arith.divf %29, %36 : vector<8x32xf32>
    %c0_19 = arith.constant 0 : index
    %c0_20 = arith.constant 0 : index
    %38 = vector.load %arg6[%c0_19, %c0_20] : memref<8x32xf32, #tpu.memory_space<vmem>>, vector<8x32xf32>
    %39 = arith.mulf %38, %38 : vector<8x32xf32>
    %cst_21 = arith.constant dense<0.000000e+00> : vector<8xf32>
    %40 = vector.multi_reduction <add>, %39, %cst_21 [1] : vector<8x32xf32> to vector<8xf32>
    %41 = vector.shape_cast %40 : vector<8xf32> to vector<8x1xf32>
    %42 = math.sqrt %41 : vector<8x1xf32>
    %cst_22 = arith.constant 9.99999996E-13 : f32
    %43 = vector.broadcast %cst_22 : f32 to vector<8x1xf32>
    %44 = arith.maximumf %42, %43 : vector<8x1xf32>
    %45 = vector.broadcast %44 : vector<8x1xf32> to vector<8x32xf32>
    %46 = arith.divf %38, %45 : vector<8x32xf32>
    %cst_23 = arith.constant dense<0.000000e+00> : vector<8x8xf32>
    %47 = tpu.matmul %28, %37, %cst_23 {dimension_numbers = #tpu.dot_dimension_numbers<[1], [1], [0], [0], [0, 0, 1, 0], [], []>} : vector<8x32xf32>, vector<8x32xf32>, vector<8x8xf32> -> vector<8x8xf32>
    %cst_24 = arith.constant 14.2857141 : f32
    %48 = vector.broadcast %cst_24 : f32 to vector<8x8xf32>
    %49 = arith.mulf %47, %48 : vector<8x8xf32>
    %50 = arith.mulf %28, %37 : vector<8x32xf32>
    %51 = vector.shape_cast %50 : vector<8x32xf32> to vector<1x8x32xf32>
    %cst_25 = arith.constant dense<0.000000e+00> : vector<1xf32>
    %52 = vector.multi_reduction <add>, %51, %cst_25 [1, 2] : vector<1x8x32xf32> to vector<1xf32>
    %53 = vector.shape_cast %52 : vector<1xf32> to vector<1x1x1xf32>
    %54 = vector.extract %53[0, 0, 0] : f32 from vector<1x1x1xf32>
    %cst_26 = arith.constant 14.2857141 : f32
    %55 = arith.mulf %54, %cst_26 : f32
    %cst_27 = arith.constant dense<0xFF800000> : vector<8xf32>
    %56 = vector.multi_reduction <maximumf>, %49, %cst_27 [1] : vector<8x8xf32> to vector<8xf32>
    %57 = vector.shape_cast %56 : vector<8xf32> to vector<8x1xf32>
    %58 = vector.broadcast %57 : vector<8x1xf32> to vector<8x8xf32>
    %59 = arith.subf %49, %58 : vector<8x8xf32>
    %60 = math.exp %59 : vector<8x8xf32>
    %cst_28 = arith.constant dense<0.000000e+00> : vector<8xf32>
    %61 = vector.multi_reduction <add>, %60, %cst_28 [1] : vector<8x8xf32> to vector<8xf32>
    %62 = vector.shape_cast %61 : vector<8xf32> to vector<8x1xf32>
    %63 = math.log %62 : vector<8x1xf32>
    %64 = arith.addf %63, %57 : vector<8x1xf32>
    %65 = vector.shape_cast %64 : vector<8x1xf32> to vector<1x8x1xf32>
    %cst_29 = arith.constant dense<0.000000e+00> : vector<1xf32>
    %66 = vector.multi_reduction <add>, %65, %cst_29 [1, 2] : vector<1x8x1xf32> to vector<1xf32>
    %67 = vector.shape_cast %66 : vector<1xf32> to vector<1x1x1xf32>
    %68 = vector.extract %67[0, 0, 0] : f32 from vector<1x1x1xf32>
    %cst_30 = arith.constant dense<0xFF800000> : vector<8xf32>
    %69 = vector.multi_reduction <maximumf>, %49, %cst_30 [0] : vector<8x8xf32> to vector<8xf32>
    %70 = vector.shape_cast %69 : vector<8xf32> to vector<1x8xf32>
    %71 = vector.broadcast %70 : vector<1x8xf32> to vector<8x8xf32>
    %72 = arith.subf %49, %71 : vector<8x8xf32>
    %73 = math.exp %72 : vector<8x8xf32>
    %cst_31 = arith.constant dense<0.000000e+00> : vector<8xf32>
    %74 = vector.multi_reduction <add>, %73, %cst_31 [0] : vector<8x8xf32> to vector<8xf32>
    %75 = vector.shape_cast %74 : vector<8xf32> to vector<1x8xf32>
    %76 = math.log %75 : vector<1x8xf32>
    %77 = arith.addf %76, %70 : vector<1x8xf32>
    %78 = vector.shape_cast %77 : vector<1x8xf32> to vector<1x1x8xf32>
    %cst_32 = arith.constant dense<0.000000e+00> : vector<1xf32>
    %79 = vector.multi_reduction <add>, %78, %cst_32 [1, 2] : vector<1x1x8xf32> to vector<1xf32>
    %80 = vector.shape_cast %79 : vector<1xf32> to vector<1x1x1xf32>
    %81 = vector.extract %80[0, 0, 0] : f32 from vector<1x1x1xf32>
    %82 = arith.subf %68, %55 : f32
    %83 = arith.subf %81, %55 : f32
    %84 = arith.addf %82, %83 : f32
    %cst_33 = arith.constant 5.000000e-01 : f32
    %85 = arith.mulf %cst_33, %84 : f32
    %cst_34 = arith.constant 8.000000e+00 : f32
    %86 = arith.divf %85, %cst_34 : f32
    %c2 = arith.constant 2 : index
    %87 = memref.load %arg7[%c2] : memref<4xf32, #tpu.memory_space<smem>>
    memref.store %86, %arg7[%c2] : memref<4xf32, #tpu.memory_space<smem>>
    %cst_35 = arith.constant dense<0.000000e+00> : vector<8x8xf32>
    %88 = tpu.matmul %28, %46, %cst_35 {dimension_numbers = #tpu.dot_dimension_numbers<[1], [1], [0], [0], [0, 0, 1, 0], [], []>} : vector<8x32xf32>, vector<8x32xf32>, vector<8x8xf32> -> vector<8x8xf32>
    %cst_36 = arith.constant 14.2857141 : f32
    %89 = vector.broadcast %cst_36 : f32 to vector<8x8xf32>
    %90 = arith.mulf %88, %89 : vector<8x8xf32>
    %91 = arith.mulf %28, %46 : vector<8x32xf32>
    %92 = vector.shape_cast %91 : vector<8x32xf32> to vector<1x8x32xf32>
    %cst_37 = arith.constant dense<0.000000e+00> : vector<1xf32>
    %93 = vector.multi_reduction <add>, %92, %cst_37 [1, 2] : vector<1x8x32xf32> to vector<1xf32>
    %94 = vector.shape_cast %93 : vector<1xf32> to vector<1x1x1xf32>
    %95 = vector.extract %94[0, 0, 0] : f32 from vector<1x1x1xf32>
    %cst_38 = arith.constant 14.2857141 : f32
    %96 = arith.mulf %95, %cst_38 : f32
    %cst_39 = arith.constant dense<0xFF800000> : vector<8xf32>
    %97 = vector.multi_reduction <maximumf>, %90, %cst_39 [1] : vector<8x8xf32> to vector<8xf32>
    %98 = vector.shape_cast %97 : vector<8xf32> to vector<8x1xf32>
    %99 = vector.broadcast %98 : vector<8x1xf32> to vector<8x8xf32>
    %100 = arith.subf %90, %99 : vector<8x8xf32>
    %101 = math.exp %100 : vector<8x8xf32>
    %cst_40 = arith.constant dense<0.000000e+00> : vector<8xf32>
    %102 = vector.multi_reduction <add>, %101, %cst_40 [1] : vector<8x8xf32> to vector<8xf32>
    %103 = vector.shape_cast %102 : vector<8xf32> to vector<8x1xf32>
    %104 = math.log %103 : vector<8x1xf32>
    %105 = arith.addf %104, %98 : vector<8x1xf32>
    %106 = vector.shape_cast %105 : vector<8x1xf32> to vector<1x8x1xf32>
    %cst_41 = arith.constant dense<0.000000e+00> : vector<1xf32>
    %107 = vector.multi_reduction <add>, %106, %cst_41 [1, 2] : vector<1x8x1xf32> to vector<1xf32>
    %108 = vector.shape_cast %107 : vector<1xf32> to vector<1x1x1xf32>
    %109 = vector.extract %108[0, 0, 0] : f32 from vector<1x1x1xf32>
    %cst_42 = arith.constant dense<0xFF800000> : vector<8xf32>
    %110 = vector.multi_reduction <maximumf>, %90, %cst_42 [0] : vector<8x8xf32> to vector<8xf32>
    %111 = vector.shape_cast %110 : vector<8xf32> to vector<1x8xf32>
    %112 = vector.broadcast %111 : vector<1x8xf32> to vector<8x8xf32>
    %113 = arith.subf %90, %112 : vector<8x8xf32>
    %114 = math.exp %113 : vector<8x8xf32>
    %cst_43 = arith.constant dense<0.000000e+00> : vector<8xf32>
    %115 = vector.multi_reduction <add>, %114, %cst_43 [0] : vector<8x8xf32> to vector<8xf32>
    %116 = vector.shape_cast %115 : vector<8xf32> to vector<1x8xf32>
    %117 = math.log %116 : vector<1x8xf32>
    %118 = arith.addf %117, %111 : vector<1x8xf32>
    %119 = vector.shape_cast %118 : vector<1x8xf32> to vector<1x1x8xf32>
    %cst_44 = arith.constant dense<0.000000e+00> : vector<1xf32>
    %120 = vector.multi_reduction <add>, %119, %cst_44 [1, 2] : vector<1x1x8xf32> to vector<1xf32>
    %121 = vector.shape_cast %120 : vector<1xf32> to vector<1x1x1xf32>
    %122 = vector.extract %121[0, 0, 0] : f32 from vector<1x1x1xf32>
    %123 = arith.subf %109, %96 : f32
    %124 = arith.subf %122, %96 : f32
    %125 = arith.addf %123, %124 : f32
    %cst_45 = arith.constant 5.000000e-01 : f32
    %126 = arith.mulf %cst_45, %125 : f32
    %cst_46 = arith.constant 8.000000e+00 : f32
    %127 = arith.divf %126, %cst_46 : f32
    %c3 = arith.constant 3 : index
    %128 = memref.load %arg7[%c3] : memref<4xf32, #tpu.memory_space<smem>>
    memref.store %127, %arg7[%c3] : memref<4xf32, #tpu.memory_space<smem>>
    return
  }
}

</mosaic_0001>

<llo_original>
// kernel: tpu_custom_call.1
$region0: #{tpu_custom_call.1}
  #allocation0 [shape = 'u32[]', space=smem, size = 0x4, offset = 0x4, fixed_abs, tag = 'smem constant byte address 0x4 - core index']
  #allocation1 [shape = 'u32[144,128]{1,0:T(1,128)}', space=vmem, size = 0x12000, scoped, tag = 'internal scratch']
  %s0 = inlined_call_operand.vmem [shape: f32[8,3], index: 0, kind: input, shape index: {}]
  %s1 = inlined_call_operand.vmem [shape: f32[8,3], index: 1, kind: input, shape index: {}]
  %s2 = inlined_call_operand.vmem [shape: f32[8,1], index: 2, kind: input, shape index: {}]
  %s3 = inlined_call_operand.vmem [shape: f32[8,1], index: 3, kind: input, shape index: {}]
  %s4 = inlined_call_operand.vmem [shape: f32[8,32], index: 4, kind: input, shape index: {}]
  %s5 = inlined_call_operand.vmem [shape: f32[8,32], index: 5, kind: input, shape index: {}]
  %s6 = inlined_call_operand.vmem [shape: f32[8,32], index: 6, kind: input, shape index: {}]
  %s7 = inlined_call_operand.hbm [shape: f32[4], index: 7, kind: output, shape index: {}]
  %s8 = sld [smem:[#allocation0]]
  $region38: #{tpu_custom_call.1} parent=0
    _
  %s10 = ssub.s32 1, %s8
  %s11 = scalar_select 0, %s10, %s8
  $region1: #{tpu_custom_call.1} parent=0
    #allocation2 [shape = 'u8[512]{0}', space=smem, size = 0x200, scoped, tag = 'output window, operand 0, single buffered']
    #allocation3 [shape = 's32[1]{0}', space=sflag, size = 0x4, scoped, tag = 'scoped memory for tpu_custom_call.1']
    %12 = vsyncpa [#allocation3], 0
    // Predicated region
    $region2: #{tpu_custom_call.1} parent=1 // pred_check
      _
    $region3: #{tpu_custom_call.1} parent=1 // pred_check_branch
      %14 = sbr.rel (0) target = $region5
    $region4: #{tpu_custom_call.1} parent=1 // pred_region
      _
    $region5: #{tpu_custom_call.1} parent=1 // pred_fallthru
      _
    // Predicated region
    $region6: #{tpu_custom_call.1} parent=1 // pred_check
      _
    $region7: #{tpu_custom_call.1} parent=1 // pred_check_branch
      %16 = sbr.rel (0) target = $region9
    $region8: #{tpu_custom_call.1} parent=1 // pred_region
      _
    $region9: #{tpu_custom_call.1} parent=1 // pred_fallthru
      _
    // Predicated region
    $region10: #{tpu_custom_call.1} parent=1 // pred_check
      _
    $region11: #{tpu_custom_call.1} parent=1 // pred_check_branch
      %18 = sbr.rel (0) target = $region13
    $region12: #{tpu_custom_call.1} parent=1 // pred_region
      _
    $region13: #{tpu_custom_call.1} parent=1 // pred_fallthru
      _
    // Predicated region
    $region14: #{tpu_custom_call.1} parent=1 // pred_check
      _
    $region15: #{tpu_custom_call.1} parent=1 // pred_check_branch
      %20 = sbr.rel (0) target = $region17
    $region16: #{tpu_custom_call.1} parent=1 // pred_region
      _
    $region17: #{tpu_custom_call.1} parent=1 // pred_fallthru
      _
    // Predicated region
    $region18: #{tpu_custom_call.1} parent=1 // pred_check
      _
    $region19: #{tpu_custom_call.1} parent=1 // pred_check_branch
      %22 = sbr.rel (0) target = $region21
    $region20: #{tpu_custom_call.1} parent=1 // pred_region
      _
    $region21: #{tpu_custom_call.1} parent=1 // pred_fallthru
      _
    // Predicated region
    $region22: #{tpu_custom_call.1} parent=1 // pred_check
      _
    $region23: #{tpu_custom_call.1} parent=1 // pred_check_branch
      %24 = sbr.rel (0) target = $region25
    $region24: #{tpu_custom_call.1} parent=1 // pred_region
      _
    $region25: #{tpu_custom_call.1} parent=1 // pred_fallthru
      _
    // Predicated region
    $region26: #{tpu_custom_call.1} parent=1 // pred_check
      _
    $region27: #{tpu_custom_call.1} parent=1 // pred_check_branch
      %26 = sbr.rel (0) target = $region29
    $region28: #{tpu_custom_call.1} parent=1 // pred_region
      _
    $region29: #{tpu_custom_call.1} parent=1 // pred_fallthru
      _
    %v27 = vld [vmem:[%s0] sm:$0xff]
    %v28 = vld [vmem:[%s1] sm:$0xff]
    %v29 = vsub.f32 %v27, %v28
    %v30 = vmul.f32 %v29, %v29
    %vm31 = vcmask 23552
    %v32 = vsel %vm31, %v30, 0.0
    %33 = vadd.xlane.f32.xlu0 %v32
    %v34 = vpop.xlane.xlu0 %33
    %v35 = vrot.slane %v34, 4
    %v36 = vadd.f32 %v34, %v35
    %v37 = vrot.slane %v36, 2
    %v38 = vadd.f32 %v36, %v37
    %v39 = vrot.slane %v38, 1
    %v40 = vadd.f32 %v38, %v39
    %s41 = vtos %v40
    %v42 = vrcp.pop 24.0
    %s43 = vtos %v42
    %s44 = smul.f32 %s41, %s43
    %s45 = scalar_lea.smem [#allocation2], 0
    %46 = sst [smem:[%s45]] %s44
    %v47 = vld [vmem:[%s2] sm:$0xff]
    %v48 = vld [vmem:[%s3] sm:$0xff]
    %v49 = vsub.f32 %v47, %v48
    %v50 = vmul.f32 %v49, %v49
    %vm51 = vcmask 7168
    %v52 = vsel %vm51, %v50, 0.0
    %53 = vadd.xlane.f32.xlu0 %v52
    %v54 = vpop.xlane.xlu0 %53
    %v55 = vrot.slane %v54, 4
    %v56 = vadd.f32 %v54, %v55
    %v57 = vrot.slane %v56, 2
    %v58 = vadd.f32 %v56, %v57
    %v59 = vrot.slane %v58, 1
    %v60 = vadd.f32 %v58, %v59
    %s61 = vtos %v60
    %v62 = vrcp.pop 8.0
    %s63 = vtos %v62
    %s64 = smul.f32 %s61, %s63
    %s65 = scalar_lea.smem [#allocation2], 1
    %66 = sst [smem:[%s65]] %s64
    %v67 = vld [vmem:[%s4] sm:$0xff]
    %v68 = vmul.f32 %v67, %v67
    %vm69 = vcmask 261120
    %v70 = vsel %vm69, %v68, 0.0
    %71 = vadd.xlane.f32.xlu0 %v70
    %v72 = vpop.xlane.xlu0 %71
    %v73 = vrsqrt.pop %v72
    %v74 = vmul.f32 %v72, %v73
    %vm75 = vcmp.eq.f32.partialorder %v72, inf
    %v76 = vsel %vm75, %v72, %v74
    %vm77 = vcmp.eq.f32.partialorder %v72, 0.0
    %v78 = vand.u32 %v72, 2147483648
    %v79 = vsel %vm77, %v78, %v76
    %v80 = vmax.f32 %v79, 1e-12
    %v81 = vrcp.pop %v80
    %v82 = vmul.f32 %v67, %v81
    %v83 = vld [vmem:[%s5] sm:$0xff]
    %v84 = vmul.f32 %v83, %v83
    %v85 = vsel %vm69, %v84, 0.0
    %86 = vadd.xlane.f32.xlu0 %v85
    %v87 = vpop.xlane.xlu0 %86
    %v88 = vrsqrt.pop %v87
    %v89 = vmul.f32 %v87, %v88
    %vm90 = vcmp.eq.f32.partialorder %v87, inf
    %v91 = vsel %vm90, %v87, %v89
    %vm92 = vcmp.eq.f32.partialorder %v87, 0.0
    %v93 = vand.u32 %v87, 2147483648
    %v94 = vsel %vm92, %v93, %v91
    %v95 = vmax.f32 %v94, 1e-12
    %v96 = vrcp.pop %v95
    %v97 = vmul.f32 %v83, %v96
    %v98 = vld [vmem:[%s6] sm:$0xff]
    %v99 = vmul.f32 %v98, %v98
    %v100 = vsel %vm69, %v99, 0.0
    %101 = vadd.xlane.f32.xlu0 %v100
    %v102 = vpop.xlane.xlu0 %101
    %v103 = vrsqrt.pop %v102
    %v104 = vmul.f32 %v102, %v103
    %vm105 = vcmp.eq.f32.partialorder %v102, inf
    %v106 = vsel %vm105, %v102, %v104
    %vm107 = vcmp.eq.f32.partialorder %v102, 0.0
    %v108 = vand.u32 %v102, 2147483648
    %v109 = vsel %vm107, %v108, %v106
    %v110 = vmax.f32 %v109, 1e-12
    %v111 = vrcp.pop %v110
    %v112 = vmul.f32 %v98, %v111
    %v114 = vsel %vm69, %v82, 0
    %v117 = vsel %vm69, %v97, 0
    %119 = vmatprep.subr.mxu0 0.0
    %120 = vmatpush1.xpose.msra.mxu0 %v117
    %121 = vmatprep.subr.mxu0 0.0
    %122 = vmatpush1.xpose.msra.mxu0 0.0
    %123 = vmatprep.subr.mxu0 0.0
    %124 = vmatpush1.xpose.msra.mxu0 0.0
    %125 = vmatprep.subr.mxu0 0.0
    %126 = vmatpush1.xpose.msra.mxu0 0.0
    %127 = vmatprep.subr.mxu0 0.0
    %128 = vmatpush1.xpose.msra.mxu0 0.0
    %129 = vmatprep.subr.mxu0 0.0
    %130 = vmatpush1.xpose.msra.mxu0 0.0
    %131 = vmatprep.subr.mxu0 0.0
    %132 = vmatpush1.xpose.msra.mxu0 0.0
    %133 = vmatprep.subr.mxu0 0.0
    %134 = vmatpush1.xpose.msra.mxu0 0.0
    %135 = vmatprep.subr.mxu0 0.0
    %136 = vmatpush1.xpose.msra.mxu0 0.0
    %137 = vmatprep.subr.mxu0 0.0
    %138 = vmatpush1.xpose.msra.mxu0 0.0
    %139 = vmatprep.subr.mxu0 0.0
    %140 = vmatpush1.xpose.msra.mxu0 0.0
    %141 = vmatprep.subr.mxu0 0.0
    %142 = vmatpush1.xpose.msra.mxu0 0.0
    %143 = vmatprep.subr.mxu0 0.0
    %144 = vmatpush1.xpose.msra.mxu0 0.0
    %145 = vmatprep.subr.mxu0 0.0
    %146 = vmatpush1.xpose.msra.mxu0 0.0
    %147 = vmatprep.subr.mxu0 0.0
    %148 = vmatpush1.xpose.msra.mxu0 0.0
    %149 = vmatprep.subr.mxu0 0.0
    %150 = vmatpush1.xpose.msra.mxu0 0.0
    %151 = vmatprep.subr.mxu0 0.0
    %152 = vmatpush1.xpose.msra.mxu0 0.0
    %153 = vmatprep.subr.mxu0 0.0
    %154 = vmatpush1.xpose.msra.mxu0 0.0
    %155 = vmatprep.subr.mxu0 0.0
    %156 = vmatpush1.xpose.msra.mxu0 0.0
    %157 = vmatprep.subr.mxu0 0.0
    %158 = vmatpush1.xpose.msra.mxu0 0.0
    %159 = vmatprep.subr.mxu0 0.0
    %160 = vmatpush1.xpose.msra.mxu0 0.0
    %161 = vmatprep.subr.mxu0 0.0
    %162 = vmatpush1.xpose.msra.mxu0 0.0
    %163 = vmatprep.subr.mxu0 0.0
    %164 = vmatpush1.xpose.msra.mxu0 0.0
    %165 = vmatprep.subr.mxu0 0.0
    %166 = vmatpush1.xpose.msra.mxu0 0.0
    %167 = vmatprep.subr.mxu0 0.0
    %168 = vmatpush1.xpose.msra.mxu0 0.0
    %169 = vmatprep.subr.mxu0 0.0
    %170 = vmatpush1.xpose.msra.mxu0 0.0
    %171 = vmatprep.subr.mxu0 0.0
    %172 = vmatpush1.xpose.msra.mxu0 0.0
    %173 = vmatprep.subr.mxu0 0.0
    %174 = vmatpush1.xpose.msra.mxu0 0.0
    %175 = vmatprep.subr.mxu0 0.0
    %176 = vmatpush1.xpose.msra.mxu0 0.0
    %177 = vmatprep.subr.mxu0 0.0
    %178 = vmatpush1.xpose.msra.mxu0 0.0
    %179 = vmatprep.subr.mxu0 0.0
    %180 = vmatpush1.xpose.msra.mxu0 0.0
    %181 = vmatprep.subr.mxu0 0.0
    %182 = vmatpush1.xpose.msra.mxu0 0.0
    %183 = vmatprep.mubr.f32.mxu0 0.0
    %184 = vmatmul.mubr.f32.gmra.mrb[0].mxu0 %v114
    %v185 = vpop.f32.mrb[0].mxu0
    %v186 = vadd.f32 0.0, %v185
    %v187 = vpop.f32.mrb[0].mxu0
    %188 = vdwg.mxu0
    %v189 = vmul.f32 %v186, 14.285714
    %v190 = vmul.f32 %v82, %v97
    %v191 = vsel %vm69, %v190, 0.0
    %192 = vadd.xlane.f32.xlu0 %v191
    %v193 = vpop.xlane.xlu0 %192
    %v194 = vrot.slane %v193, 4
    %v195 = vadd.f32 %v193, %v194
    %v196 = vrot.slane %v195, 2
    %v197 = vadd.f32 %v195, %v196
    %v198 = vrot.slane %v197, 1
    %v199 = vadd.f32 %v197, %v198
    %s200 = vtos %v199
    %s201 = smul.f32 %s200, 14.285714
    %vm202 = vcmask 64512
    %v203 = vsel %vm202, %v189, -inf
    %204 = vmax.xlane.f32.xlu0 %v203
    %v205 = vpop.xlane.xlu0 %204
    %v206 = vsub.f32 %v189, %v205
    %v207 = vmul.f32 %v206, 1.442695
    %v208 = vpow.pop %v207
    %v209 = vsel %vm202, %v208, 0.0
    %210 = vadd.xlane.f32.xlu0 %v209
    %v211 = vpop.xlane.xlu0 %210
    %v212 = vlog2.pop %v211
    %v213 = vmul.f32 %v212, 0.6931472
    %v214 = vadd.f32 %v213, %v205
    %v215 = vsel %vm51, %v214, 0.0
    %216 = vadd.xlane.f32.xlu0 %v215
    %v217 = vpop.xlane.xlu0 %216
    %v218 = vrot.slane %v217, 4
    %v219 = vadd.f32 %v217, %v218
    %v220 = vrot.slane %v219, 2
    %v221 = vadd.f32 %v219, %v220
    %v222 = vrot.slane %v221, 1
    %v223 = vadd.f32 %v221, %v222
    %s224 = vtos %v223
    %v225 = vrot.slane %v203, 4
    %v226 = vmax.f32 %v203, %v225
    %v227 = vrot.slane %v226, 2
    %v228 = vmax.f32 %v226, %v227
    %v229 = vrot.slane %v228, 1
    %v230 = vmax.f32 %v228, %v229
    %v231 = vsub.f32 %v189, %v230
    %v232 = vmul.f32 %v231, 1.442695
    %v233 = vpow.pop %v232
    %v234 = vsel %vm202, %v233, 0.0
    %v235 = vrot.slane %v234, 4
    %v236 = vadd.f32 %v234, %v235
    %v237 = vrot.slane %v236, 2
    %v238 = vadd.f32 %v236, %v237
    %v239 = vrot.slane %v238, 1
    %v240 = vadd.f32 %v238, %v239
    %v241 = vlog2.pop %v240
    %v242 = vmul.f32 %v241, 0.6931472
    %v243 = vadd.f32 %v242, %v230
    %vm244 = vcmask 57344
    %v245 = vsel %vm244, %v243, 0.0
    %246 = vadd.xlane.f32.xlu0 %v245
    %v247 = vpop.xlane.xlu0 %246
    %v248 = vrot.slane %v247, 4
    %v249 = vadd.f32 %v247, %v248
    %v250 = vrot.slane %v249, 2
    %v251 = vadd.f32 %v249, %v250
    %v252 = vrot.slane %v251, 1
    %v253 = vadd.f32 %v251, %v252
    %s254 = vtos %v253
    %s255 = ssub.f32 %s224, %s201
    %s256 = ssub.f32 %s254, %s201
    %s257 = sadd.f32 %s255, %s256
    %s258 = smul.f32 %s257, 0.5
    %v259 = vrcp.pop 8.0
    %s260 = vtos %v259
    %s261 = smul.f32 %s258, %s260
    %s262 = scalar_lea.smem [#allocation2], 2
    %263 = sst [smem:[%s262]] %s261
    %v265 = vsel %vm69, %v112, 0
    %267 = vmatprep.subr.mxu0 0.0
    %268 = vmatpush1.xpose.msra.mxu0 %v265
    %269 = vmatprep.subr.mxu0 0.0
    %270 = vmatpush1.xpose.msra.mxu0 0.0
    %271 = vmatprep.subr.mxu0 0.0
    %272 = vmatpush1.xpose.msra.mxu0 0.0
    %273 = vmatprep.subr.mxu0 0.0
    %274 = vmatpush1.xpose.msra.mxu0 0.0
    %275 = vmatprep.subr.mxu0 0.0
    %276 = vmatpush1.xpose.msra.mxu0 0.0
    %277 = vmatprep.subr.mxu0 0.0
    %278 = vmatpush1.xpose.msra.mxu0 0.0
    %279 = vmatprep.subr.mxu0 0.0
    %280 = vmatpush1.xpose.msra.mxu0 0.0
    %281 = vmatprep.subr.mxu0 0.0
    %282 = vmatpush1.xpose.msra.mxu0 0.0
    %283 = vmatprep.subr.mxu0 0.0
    %284 = vmatpush1.xpose.msra.mxu0 0.0
    %285 = vmatprep.subr.mxu0 0.0
    %286 = vmatpush1.xpose.msra.mxu0 0.0
    %287 = vmatprep.subr.mxu0 0.0
    %288 = vmatpush1.xpose.msra.mxu0 0.0
    %289 = vmatprep.subr.mxu0 0.0
    %290 = vmatpush1.xpose.msra.mxu0 0.0
    %291 = vmatprep.subr.mxu0 0.0
    %292 = vmatpush1.xpose.msra.mxu0 0.0
    %293 = vmatprep.subr.mxu0 0.0
    %294 = vmatpush1.xpose.msra.mxu0 0.0
    %295 = vmatprep.subr.mxu0 0.0
    %296 = vmatpush1.xpose.msra.mxu0 0.0
    %297 = vmatprep.subr.mxu0 0.0
    %298 = vmatpush1.xpose.msra.mxu0 0.0
    %299 = vmatprep.subr.mxu0 0.0
    %300 = vmatpush1.xpose.msra.mxu0 0.0
    %301 = vmatprep.subr.mxu0 0.0
    %302 = vmatpush1.xpose.msra.mxu0 0.0
    %303 = vmatprep.subr.mxu0 0.0
    %304 = vmatpush1.xpose.msra.mxu0 0.0
    %305 = vmatprep.subr.mxu0 0.0
    %306 = vmatpush1.xpose.msra.mxu0 0.0
    %307 = vmatprep.subr.mxu0 0.0
    %308 = vmatpush1.xpose.msra.mxu0 0.0
    %309 = vmatprep.subr.mxu0 0.0
    %310 = vmatpush1.xpose.msra.mxu0 0.0
    %311 = vmatprep.subr.mxu0 0.0
    %312 = vmatpush1.xpose.msra.mxu0 0.0
    %313 = vmatprep.subr.mxu0 0.0
    %314 = vmatpush1.xpose.msra.mxu0 0.0
    %315 = vmatprep.subr.mxu0 0.0
    %316 = vmatpush1.xpose.msra.mxu0 0.0
    %317 = vmatprep.subr.mxu0 0.0
    %318 = vmatpush1.xpose.msra.mxu0 0.0
    %319 = vmatprep.subr.mxu0 0.0
    %320 = vmatpush1.xpose.msra.mxu0 0.0
    %321 = vmatprep.subr.mxu0 0.0
    %322 = vmatpush1.xpose.msra.mxu0 0.0
    %323 = vmatprep.subr.mxu0 0.0
    %324 = vmatpush1.xpose.msra.mxu0 0.0
    %325 = vmatprep.subr.mxu0 0.0
    %326 = vmatpush1.xpose.msra.mxu0 0.0
    %327 = vmatprep.subr.mxu0 0.0
    %328 = vmatpush1.xpose.msra.mxu0 0.0
    %329 = vmatprep.subr.mxu0 0.0
    %330 = vmatpush1.xpose.msra.mxu0 0.0
    %331 = vmatprep.mubr.f32.mxu0 0.0
    %332 = vmatmul.mubr.f32.gmra.mrb[0].mxu0 %v114
    %v333 = vpop.f32.mrb[0].mxu0
    %v334 = vadd.f32 0.0, %v333
    %v335 = vpop.f32.mrb[0].mxu0
    %336 = vdwg.mxu0
    %v337 = vmul.f32 %v334, 14.285714
    %v338 = vmul.f32 %v82, %v112
    %v339 = vsel %vm69, %v338, 0.0
    %340 = vadd.xlane.f32.xlu0 %v339
    %v341 = vpop.xlane.xlu0 %340
    %v342 = vrot.slane %v341, 4
    %v343 = vadd.f32 %v341, %v342
    %v344 = vrot.slane %v343, 2
    %v345 = vadd.f32 %v343, %v344
    %v346 = vrot.slane %v345, 1
    %v347 = vadd.f32 %v345, %v346
    %s348 = vtos %v347
    %s349 = smul.f32 %s348, 14.285714
    %v350 = vsel %vm202, %v337, -inf
    %351 = vmax.xlane.f32.xlu0 %v350
    %v352 = vpop.xlane.xlu0 %351
    %v353 = vsub.f32 %v337, %v352
    %v354 = vmul.f32 %v353, 1.442695
    %v355 = vpow.pop %v354
    %v356 = vsel %vm202, %v355, 0.0
    %357 = vadd.xlane.f32.xlu0 %v356
    %v358 = vpop.xlane.xlu0 %357
    %v359 = vlog2.pop %v358
    %v360 = vmul.f32 %v359, 0.6931472
    %v361 = vadd.f32 %v360, %v352
    %v362 = vsel %vm51, %v361, 0.0
    %363 = vadd.xlane.f32.xlu0 %v362
    %v364 = vpop.xlane.xlu0 %363
    %v365 = vrot.slane %v364, 4
    %v366 = vadd.f32 %v364, %v365
    %v367 = vrot.slane %v366, 2
    %v368 = vadd.f32 %v366, %v367
    %v369 = vrot.slane %v368, 1
    %v370 = vadd.f32 %v368, %v369
    %s371 = vtos %v370
    %v372 = vrot.slane %v350, 4
    %v373 = vmax.f32 %v350, %v372
    %v374 = vrot.slane %v373, 2
    %v375 = vmax.f32 %v373, %v374
    %v376 = vrot.slane %v375, 1
    %v377 = vmax.f32 %v375, %v376
    %v378 = vsub.f32 %v337, %v377
    %v379 = vmul.f32 %v378, 1.442695
    %v380 = vpow.pop %v379
    %v381 = vsel %vm202, %v380, 0.0
    %v382 = vrot.slane %v381, 4
    %v383 = vadd.f32 %v381, %v382
    %v384 = vrot.slane %v383, 2
    %v385 = vadd.f32 %v383, %v384
    %v386 = vrot.slane %v385, 1
    %v387 = vadd.f32 %v385, %v386
    %v388 = vlog2.pop %v387
    %v389 = vmul.f32 %v388, 0.6931472
    %v390 = vadd.f32 %v389, %v377
    %v391 = vsel %vm244, %v390, 0.0
    %392 = vadd.xlane.f32.xlu0 %v391
    %v393 = vpop.xlane.xlu0 %392
    %v394 = vrot.slane %v393, 4
    %v395 = vadd.f32 %v393, %v394
    %v396 = vrot.slane %v395, 2
    %v397 = vadd.f32 %v395, %v396
    %v398 = vrot.slane %v397, 1
    %v399 = vadd.f32 %v397, %v398
    %s400 = vtos %v399
    %s401 = ssub.f32 %s371, %s349
    %s402 = ssub.f32 %s400, %s349
    %s403 = sadd.f32 %s401, %s402
    %s404 = smul.f32 %s403, 0.5
    %v405 = vrcp.pop 8.0
    %s406 = vtos %v405
    %s407 = smul.f32 %s404, %s406
    %s408 = scalar_lea.smem [#allocation2], 3
    %409 = sst [smem:[%s408]] %s407
    // Predicated region
    $region30: #{tpu_custom_call.1} parent=1 // pred_check
      _
    $region31: #{tpu_custom_call.1} parent=1 // pred_check_branch
      %411 = sbr.rel (0) target = $region33
    $region32: #{tpu_custom_call.1} parent=1 // pred_region
      %s413 = ssub.s32 16, 16
      %414 = vsyncadd [#allocation3], %s413
      %417 = dma.smem_to_hbm [#allocation2], 16, %s7, [#allocation3]
    $region33: #{tpu_custom_call.1} parent=1 // pred_fallthru
      _
    // Predicated region
    $region34: #{tpu_custom_call.1} parent=1 // pred_check
      _
    $region35: #{tpu_custom_call.1} parent=1 // pred_check_branch
      %419 = sbr.rel (0) target = $region37
    $region36: #{tpu_custom_call.1} parent=1 // pred_region
      %420 = dma.done [#allocation3], 16
    $region37: #{tpu_custom_call.1} parent=1 // pred_fallthru
      _
    %421 = sfence
    %422 = vsyncpa [#allocation3], 1

</llo_original>
